<compile_context>
chip_gen: v7x
topology: tpu7x:2x2x1
jax: 0.10.0
libtpu: 0.0.40
codegen_flags: <defaults>
</compile_context>

<pallas_src>
import functools
from typing import NamedTuple

import jax
import jax.numpy as jnp
from jax.experimental import pallas as pl
from jax.experimental.pallas import tpu as pltpu

EPS = 1e-5
LANE = 128             # feature padding multiple (128 = v5e MXU width)
MAX_BATCH_BLOCK = 128  # batch tile for the no-BN (grid-tiled) path


def _round_up(n, m):
    return ((n + m - 1) // m) * m


def _sublane(dtype):
    # 16-bit dtypes pack two rows per sublane -> pad batch to 16; else 8.
    return 16 if jnp.dtype(dtype).itemsize == 2 else 8


def _fused_mlp_kernel(*refs, n_layers, n_rows, batch_norm, matmul_dtype):
    """Fused (Linear -> [BatchNorm1d] -> ReLU) x n_layers.

    refs = [x_ref, (w_i, gamma_i, beta_i) * L | (w_i, b_i) * L, o_ref]
      x_ref: (Bblk, C0_pad)  VMEM, native dtype
      w_i:   (Ci_pad, Ci+1_pad) VMEM, matmul_dtype (pre-transposed: x @ W)
      gamma/beta/b: (1, Ci+1_pad) VMEM, f32
    `n_rows` is the LOGICAL batch size; padded rows are excluded from BN stats.
    """
    x_ref = refs[0]
    o_ref = refs[-1]
    layer_refs = refs[1:-1]
    per_layer = 3 if batch_norm else 2

    h = x_ref[...].astype(matmul_dtype)
    b_blk = h.shape[0]

    need_row_mask = batch_norm and (b_blk != n_rows)
    if need_row_mask:
        row_ids = jax.lax.broadcasted_iota(jnp.int32, (b_blk, 1), 0)
        row_mask = (row_ids < n_rows).astype(jnp.float32)
    inv_n = 1.0 / float(n_rows)

    for li in range(n_layers):
        lrefs = layer_refs[per_layer * li: per_layer * (li + 1)]
        w_ref = lrefs[0]

        # Linear on the MXU: inputs in matmul_dtype, f32 accumulation.
        y = jnp.dot(h, w_ref[...], preferred_element_type=jnp.float32)

        if batch_norm:
            g_ref, beta_ref = lrefs[1], lrefs[2]
            # Linear bias cancels exactly against the batch-mean subtraction,
            # so it was never passed in.  Two-pass (centered) variance.
            if need_row_mask:
                mean = jnp.sum(y * row_mask, axis=0, keepdims=True) * inv_n
                d = y - mean
                dm = d * row_mask
                var = jnp.sum(dm * dm, axis=0, keepdims=True) * inv_n
            else:
                mean = jnp.sum(y, axis=0, keepdims=True) * inv_n
                d = y - mean
                var = jnp.sum(d * d, axis=0, keepdims=True) * inv_n
            scale = jax.lax.rsqrt(var + EPS) * g_ref[...]      # EUP rsqrt
            y = d * scale + beta_ref[...]
        else:
            b_ref = lrefs[1]
            y = y + b_ref[...]

        y = jnp.maximum(y, 0.0)                # ReLU in f32
        if li + 1 < n_layers:
            h = y.astype(matmul_dtype)         # narrow activations between layers
        else:
            o_ref[...] = y.astype(o_ref.dtype)


class PreparedMLP(NamedTuple):
    param_inputs: tuple   # padded / pre-cast parameter arrays, kernel order
    param_specs: tuple    # matching BlockSpecs (constant index_map)
    sizes: tuple          # logical feature sizes
    sizes_p: tuple        # padded feature sizes
    batch_norm: bool
    matmul_dtype: object


def prepare_mlp_params(params, in_size, *, batch_norm=True,
                       matmul_dtype=jnp.bfloat16, lane=LANE):
    """Pad + cast parameters ONCE (outside the per-call hot path).

    params: list of (w, b, gamma, beta), w stored pre-transposed (Cin, Cout).
    Weights -> matmul_dtype (bf16 default: native MXU rate, half the DMA/VMEM);
    bias/gamma/beta stay f32.  When batch_norm=True the Linear bias is dropped
    entirely (dead input).
    """
    sizes = (in_size,) + tuple(w.shape[1] for (w, _, _, _) in params)
    sizes_p = tuple(_round_up(s, lane) for s in sizes)

    def pad2(a, shape, dtype):
        a = jnp.asarray(a, dtype)
        return jnp.pad(a, [(0, shape[0] - a.shape[0]),
                           (0, shape[1] - a.shape[1])])

    inputs, specs = [], []
    for li, (w, b, g, be) in enumerate(params):
        cin_p, cout_p = sizes_p[li], sizes_p[li + 1]
        inputs.append(pad2(w, (cin_p, cout_p), matmul_dtype))
        specs.append(pl.BlockSpec((cin_p, cout_p), lambda i: (0, 0)))
        if batch_norm:
            inputs.append(pad2(g, (1, cout_p), jnp.float32))
            inputs.append(pad2(be, (1, cout_p), jnp.float32))
            specs.append(pl.BlockSpec((1, cout_p), lambda i: (0, 0)))
            specs.append(pl.BlockSpec((1, cout_p), lambda i: (0, 0)))
        else:
            inputs.append(pad2(b, (1, cout_p), jnp.float32))
            specs.append(pl.BlockSpec((1, cout_p), lambda i: (0, 0)))
    return PreparedMLP(tuple(inputs), tuple(specs), sizes, sizes_p,
                       batch_norm, matmul_dtype)


def mlp_forward(x, prepared: PreparedMLP):
    """Run the whole MLP in a single fused Pallas kernel."""
    B, c0 = x.shape
    assert c0 == prepared.sizes[0]
    sizes_p = prepared.sizes_p
    batch_norm = prepared.batch_norm
    n_layers = len(prepared.sizes) - 1

    sub = _sublane(x.dtype)
    if batch_norm:
        # Full-batch statistics -> whole (padded) batch in one grid step.
        block_b = _round_up(B, sub)
        grid = (1,)
        semantics = ("arbitrary",)
    else:
        # No cross-row coupling: tile the batch; megacore can shard the axis.
        block_b = min(_round_up(B, sub), MAX_BATCH_BLOCK)
        grid = (pl.cdiv(B, block_b),)
        semantics = ("parallel",)
    b_pad = grid[0] * block_b

    # Pad activations in their NATIVE dtype (cast happens inside the kernel).
    x_p = jnp.pad(x, [(0, b_pad - B), (0, sizes_p[0] - c0)])

    x_spec = pl.BlockSpec((block_b, sizes_p[0]), lambda i: (i, 0))
    out_spec = pl.BlockSpec((block_b, sizes_p[-1]), lambda i: (i, 0))

    kernel = functools.partial(
        _fused_mlp_kernel,
        n_layers=n_layers,
        n_rows=B,
        batch_norm=batch_norm,
        matmul_dtype=prepared.matmul_dtype,
    )

    # Explicit VMEM budget: double-buffered inputs/outputs + headroom,
    # capped at 100 MiB (re-derive / stream weights for v7x-sized models).
    in_bytes = x_p.size * x_p.dtype.itemsize + sum(
        int(a.size) * a.dtype.itemsize for a in prepared.param_inputs)
    out_bytes = b_pad * sizes_p[-1] * jnp.dtype(x.dtype).itemsize
    vmem_limit = int(min(100 << 20,
                         max(32 << 20, 2 * (in_bytes + out_bytes) + (1 << 20))))

    # TODO(synk): params use constant index_maps and are never re-fetched;
    # pipeline_mode=pl.Buffered(1) on their BlockSpecs would halve their VMEM
    # if the compiler double-buffers them (matters for v7x's 64 MiB VMEM).
    out_p = pl.pallas_call(
        kernel,
        out_shape=jax.ShapeDtypeStruct((b_pad, sizes_p[-1]), x.dtype),
        grid=grid,
        in_specs=[x_spec, *prepared.param_specs],
        out_specs=out_spec,
        compiler_params=pltpu.CompilerParams(
            dimension_semantics=semantics,
            vmem_limit_bytes=vmem_limit,
        ),
    )(x_p, *prepared.param_inputs)

    # Slice the logical (un-padded) result back out.
    return out_p[:B, :prepared.sizes[-1]]


def init_mlp_params(key, sizes):
    """nn.Linear-style init: weight/bias ~ U(-1/sqrt(fan_in), 1/sqrt(fan_in));
    BN gamma=1, beta=0.  Weights stored pre-transposed (Cin, Cout)."""
    params = []
    for i in range(len(sizes) - 1):
        cin, cout = sizes[i], sizes[i + 1]
        key, kw, kb = jax.random.split(key, 3)
        bound = 1.0 / (cin ** 0.5)
        w = jax.random.uniform(kw, (cin, cout), jnp.float32, -bound, bound)
        b = jax.random.uniform(kb, (1, cout), jnp.float32, -bound, bound)
        gamma = jnp.ones((1, cout), jnp.float32)
        beta = jnp.zeros((1, cout), jnp.float32)
        params.append((w, b, gamma, beta))
    return params


def mlp_forward_ref(x, params, *, batch_norm=True, matmul_dtype=jnp.float32):
    """Pure-JAX reference (mirrors PyTorch Linear -> BatchNorm1d -> ReLU).
    `matmul_dtype` lets us build a bit-matched bf16-matmul reference."""
    h = x
    for (w, b, gamma, beta) in params:
        y = jnp.dot(h.astype(matmul_dtype), w.astype(matmul_dtype),
                    preferred_element_type=jnp.float32)
        if batch_norm:
            mean = jnp.mean(y, axis=0, keepdims=True)
            var = jnp.mean((y - mean) ** 2, axis=0, keepdims=True)
            y = (y - mean) * jax.lax.rsqrt(var + EPS) * gamma + beta
        else:
            y = y + b
        h = jnp.maximum(y, 0.0)
    return h.astype(x.dtype)


if __name__ == "__main__":
    sizes = [16, 32, 8]          # MLP(sizes=[16, 32, 8], batch_norm=True)

    key = jax.random.PRNGKey(0)
    key, kp = jax.random.split(key)
    params = init_mlp_params(kp, sizes)

    # Prepared (padded / pre-cast) parameter sets -- built once, reused per call.
    prep_f32_bn = prepare_mlp_params(params, sizes[0], batch_norm=True,
                                     matmul_dtype=jnp.float32)
    prep_bf16_bn = prepare_mlp_params(params, sizes[0], batch_norm=True)  # bf16 default
    prep_f32_nobn = prepare_mlp_params(params, sizes[0], batch_norm=False,
                                       matmul_dtype=jnp.float32)

    # Case 1: BN, f32 matmul, batch multiple of 8 (no row padding).
    key, kx = jax.random.split(key)
    x8 = jax.random.normal(kx, (8, sizes[0]), jnp.float32)
    out = jax.block_until_ready(mlp_forward(x8, prep_f32_bn))
    ref = mlp_forward_ref(x8, params, batch_norm=True)
    assert out.shape == (8, sizes[-1])
    assert jnp.allclose(out, ref, atol=1e-4, rtol=1e-4), "mismatch (BN, f32, B=8)"

    # Case 2: BN, f32 matmul, batch NOT a multiple of 8 (exercises row mask).
    key, kx = jax.random.split(key)
    x5 = jax.random.normal(kx, (5, sizes[0]), jnp.float32)
    out = jax.block_until_ready(mlp_forward(x5, prep_f32_bn))
    ref = mlp_forward_ref(x5, params, batch_norm=True)
    assert out.shape == (5, sizes[-1])
    assert jnp.allclose(out, ref, atol=1e-4, rtol=1e-4), "mismatch (BN, f32, B=5)"

    # Case 3: BN, bf16 matmul (the recommended MXU path); compare against a
    # bf16-matmul reference -- expected precision loss vs f32 is not a bug.
    out = jax.block_until_ready(mlp_forward(x8, prep_bf16_bn))
    ref = mlp_forward_ref(x8, params, batch_norm=True, matmul_dtype=jnp.bfloat16)
    assert jnp.allclose(out, ref, atol=2e-3, rtol=2e-3), "mismatch (BN, bf16)"

    # Case 4: no BN (Linear + bias + ReLU only) -> batch-tiled "parallel" grid.
    out = jax.block_until_ready(mlp_forward(x8, prep_f32_nobn))
    ref = mlp_forward_ref(x8, params, batch_norm=False)
    assert jnp.allclose(out, ref, atol=1e-4, rtol=1e-4), "mismatch (no BN)"

    print("KERNEL_OK")
</pallas_src>

<mosaic_0001>
module attributes {stable_mosaic.version = 11 : i64} {
  func.func @_fused_mlp_kernel(%arg0: i32, %arg1: memref<8x128xf32, #tpu.memory_space<vmem>>, %arg2: memref<128x128xf32, #tpu.memory_space<vmem>>, %arg3: memref<1x128xf32, #tpu.memory_space<vmem>>, %arg4: memref<1x128xf32, #tpu.memory_space<vmem>>, %arg5: memref<128x128xf32, #tpu.memory_space<vmem>>, %arg6: memref<1x128xf32, #tpu.memory_space<vmem>>, %arg7: memref<1x128xf32, #tpu.memory_space<vmem>>, %arg8: memref<8x128xf32, #tpu.memory_space<vmem>>) attributes {dimension_semantics = [#tpu.dimension_semantics<arbitrary>], iteration_bounds = array<i64: 1>, scalar_prefetch = 0 : i64, scratch_operands = 0 : i64, tpu.core_type = #tpu.core_type<tc>, window_params = [{transform_indices = @transform_0, window_bounds = array<i64: 8, 128>}, {pipeline_mode = #tpu.pipeline_mode<synchronous>, transform_indices = @transform_1, window_bounds = array<i64: 128, 128>}, {pipeline_mode = #tpu.pipeline_mode<synchronous>, transform_indices = @transform_2, window_bounds = array<i64: 1, 128>}, {pipeline_mode = #tpu.pipeline_mode<synchronous>, transform_indices = @transform_3, window_bounds = array<i64: 1, 128>}, {pipeline_mode = #tpu.pipeline_mode<synchronous>, transform_indices = @transform_4, window_bounds = array<i64: 128, 128>}, {pipeline_mode = #tpu.pipeline_mode<synchronous>, transform_indices = @transform_5, window_bounds = array<i64: 1, 128>}, {pipeline_mode = #tpu.pipeline_mode<synchronous>, transform_indices = @transform_6, window_bounds = array<i64: 1, 128>}, {transform_indices = @transform_7, window_bounds = array<i64: 8, 128>}]} {
    %c0 = arith.constant 0 : index
    %c0_0 = arith.constant 0 : index
    %0 = vector.load %arg1[%c0, %c0_0] : memref<8x128xf32, #tpu.memory_space<vmem>>, vector<8x128xf32>
    %c0_1 = arith.constant 0 : index
    %c0_2 = arith.constant 0 : index
    %1 = vector.load %arg2[%c0_1, %c0_2] : memref<128x128xf32, #tpu.memory_space<vmem>>, vector<128x128xf32>
    %cst = arith.constant dense<0.000000e+00> : vector<8x128xf32>
    %2 = tpu.matmul %0, %1, %cst {dimension_numbers = #tpu.dot_dimension_numbers<[1], [0], [0], [1], [0, 0, 1, 1], [], []>} : vector<8x128xf32>, vector<128x128xf32>, vector<8x128xf32> -> vector<8x128xf32>
    %cst_3 = arith.constant dense<0.000000e+00> : vector<128xf32>
    %3 = vector.multi_reduction <add>, %2, %cst_3 [0] : vector<8x128xf32> to vector<128xf32>
    %4 = vector.shape_cast %3 : vector<128xf32> to vector<1x128xf32>
    %cst_4 = arith.constant 1.250000e-01 : f32
    %5 = vector.broadcast %cst_4 : f32 to vector<1x128xf32>
    %6 = arith.mulf %4, %5 : vector<1x128xf32>
    %7 = vector.broadcast %6 : vector<1x128xf32> to vector<8x128xf32>
    %8 = arith.subf %2, %7 : vector<8x128xf32>
    %9 = arith.mulf %8, %8 : vector<8x128xf32>
    %cst_5 = arith.constant dense<0.000000e+00> : vector<128xf32>
    %10 = vector.multi_reduction <add>, %9, %cst_5 [0] : vector<8x128xf32> to vector<128xf32>
    %11 = vector.shape_cast %10 : vector<128xf32> to vector<1x128xf32>
    %cst_6 = arith.constant 1.250000e-01 : f32
    %12 = vector.broadcast %cst_6 : f32 to vector<1x128xf32>
    %13 = arith.mulf %11, %12 : vector<1x128xf32>
    %cst_7 = arith.constant 9.99999974E-6 : f32
    %14 = vector.broadcast %cst_7 : f32 to vector<1x128xf32>
    %15 = arith.addf %13, %14 : vector<1x128xf32>
    %16 = math.rsqrt %15 : vector<1x128xf32>
    %c0_8 = arith.constant 0 : index
    %c0_9 = arith.constant 0 : index
    %17 = vector.load %arg3[%c0_8, %c0_9] : memref<1x128xf32, #tpu.memory_space<vmem>>, vector<1x128xf32>
    %18 = arith.mulf %16, %17 : vector<1x128xf32>
    %19 = vector.broadcast %18 : vector<1x128xf32> to vector<8x128xf32>
    %20 = arith.mulf %8, %19 : vector<8x128xf32>
    %c0_10 = arith.constant 0 : index
    %c0_11 = arith.constant 0 : index
    %21 = vector.load %arg4[%c0_10, %c0_11] : memref<1x128xf32, #tpu.memory_space<vmem>>, vector<1x128xf32>
    %22 = vector.broadcast %21 : vector<1x128xf32> to vector<8x128xf32>
    %23 = arith.addf %20, %22 : vector<8x128xf32>
    %cst_12 = arith.constant 0.000000e+00 : f32
    %24 = vector.broadcast %cst_12 : f32 to vector<8x128xf32>
    %25 = arith.maximumf %23, %24 : vector<8x128xf32>
    %c0_13 = arith.constant 0 : index
    %c0_14 = arith.constant 0 : index
    %26 = vector.load %arg5[%c0_13, %c0_14] : memref<128x128xf32, #tpu.memory_space<vmem>>, vector<128x128xf32>
    %cst_15 = arith.constant dense<0.000000e+00> : vector<8x128xf32>
    %27 = tpu.matmul %25, %26, %cst_15 {dimension_numbers = #tpu.dot_dimension_numbers<[1], [0], [0], [1], [0, 0, 1, 1], [], []>} : vector<8x128xf32>, vector<128x128xf32>, vector<8x128xf32> -> vector<8x128xf32>
    %cst_16 = arith.constant dense<0.000000e+00> : vector<128xf32>
    %28 = vector.multi_reduction <add>, %27, %cst_16 [0] : vector<8x128xf32> to vector<128xf32>
    %29 = vector.shape_cast %28 : vector<128xf32> to vector<1x128xf32>
    %cst_17 = arith.constant 1.250000e-01 : f32
    %30 = vector.broadcast %cst_17 : f32 to vector<1x128xf32>
    %31 = arith.mulf %29, %30 : vector<1x128xf32>
    %32 = vector.broadcast %31 : vector<1x128xf32> to vector<8x128xf32>
    %33 = arith.subf %27, %32 : vector<8x128xf32>
    %34 = arith.mulf %33, %33 : vector<8x128xf32>
    %cst_18 = arith.constant dense<0.000000e+00> : vector<128xf32>
    %35 = vector.multi_reduction <add>, %34, %cst_18 [0] : vector<8x128xf32> to vector<128xf32>
    %36 = vector.shape_cast %35 : vector<128xf32> to vector<1x128xf32>
    %cst_19 = arith.constant 1.250000e-01 : f32
    %37 = vector.broadcast %cst_19 : f32 to vector<1x128xf32>
    %38 = arith.mulf %36, %37 : vector<1x128xf32>
    %cst_20 = arith.constant 9.99999974E-6 : f32
    %39 = vector.broadcast %cst_20 : f32 to vector<1x128xf32>
    %40 = arith.addf %38, %39 : vector<1x128xf32>
    %41 = math.rsqrt %40 : vector<1x128xf32>
    %c0_21 = arith.constant 0 : index
    %c0_22 = arith.constant 0 : index
    %42 = vector.load %arg6[%c0_21, %c0_22] : memref<1x128xf32, #tpu.memory_space<vmem>>, vector<1x128xf32>
    %43 = arith.mulf %41, %42 : vector<1x128xf32>
    %44 = vector.broadcast %43 : vector<1x128xf32> to vector<8x128xf32>
    %45 = arith.mulf %33, %44 : vector<8x128xf32>
    %c0_23 = arith.constant 0 : index
    %c0_24 = arith.constant 0 : index
    %46 = vector.load %arg7[%c0_23, %c0_24] : memref<1x128xf32, #tpu.memory_space<vmem>>, vector<1x128xf32>
    %47 = vector.broadcast %46 : vector<1x128xf32> to vector<8x128xf32>
    %48 = arith.addf %45, %47 : vector<8x128xf32>
    %cst_25 = arith.constant 0.000000e+00 : f32
    %49 = vector.broadcast %cst_25 : f32 to vector<8x128xf32>
    %50 = arith.maximumf %48, %49 : vector<8x128xf32>
    %c0_26 = arith.constant 0 : index
    %c0_27 = arith.constant 0 : index
    %51 = vector.load %arg8[%c0_26, %c0_27] : memref<8x128xf32, #tpu.memory_space<vmem>>, vector<8x128xf32>
    tpu.vector_store %arg8[%c0_26, %c0_27], %50 {strides = array<i32>} : memref<8x128xf32, #tpu.memory_space<vmem>>, vector<8x128xf32>,
    return
  }
  func.func @transform_0(%arg0: i32) -> (i32, i32) {
    %c0_i32 = arith.constant 0 : i32
    %c0_i32_0 = arith.constant 0 : i32
    return %arg0, %c0_i32 : i32, i32
  }
  func.func @transform_1(%arg0: i32) -> (i32, i32) {
    %c0_i32 = arith.constant 0 : i32
    %c0_i32_0 = arith.constant 0 : i32
    %c0_i32_1 = arith.constant 0 : i32
    return %c0_i32, %c0_i32_0 : i32, i32
  }
  func.func @transform_2(%arg0: i32) -> (i32, i32) {
    %c0_i32 = arith.constant 0 : i32
    %c0_i32_0 = arith.constant 0 : i32
    %c0_i32_1 = arith.constant 0 : i32
    return %c0_i32, %c0_i32_0 : i32, i32
  }
  func.func @transform_3(%arg0: i32) -> (i32, i32) {
    %c0_i32 = arith.constant 0 : i32
    %c0_i32_0 = arith.constant 0 : i32
    %c0_i32_1 = arith.constant 0 : i32
    return %c0_i32, %c0_i32_0 : i32, i32
  }
  func.func @transform_4(%arg0: i32) -> (i32, i32) {
    %c0_i32 = arith.constant 0 : i32
    %c0_i32_0 = arith.constant 0 : i32
    %c0_i32_1 = arith.constant 0 : i32
    return %c0_i32, %c0_i32_0 : i32, i32
  }
  func.func @transform_5(%arg0: i32) -> (i32, i32) {
    %c0_i32 = arith.constant 0 : i32
    %c0_i32_0 = arith.constant 0 : i32
    %c0_i32_1 = arith.constant 0 : i32
    return %c0_i32, %c0_i32_0 : i32, i32
  }
  func.func @transform_6(%arg0: i32) -> (i32, i32) {
    %c0_i32 = arith.constant 0 : i32
    %c0_i32_0 = arith.constant 0 : i32
    %c0_i32_1 = arith.constant 0 : i32
    return %c0_i32, %c0_i32_0 : i32, i32
  }
  func.func @transform_7(%arg0: i32) -> (i32, i32) {
    %c0_i32 = arith.constant 0 : i32
    %c0_i32_0 = arith.constant 0 : i32
    return %arg0, %c0_i32 : i32, i32
  }
}

</mosaic_0001>

<llo_original>
// kernel: tpu_custom_call.1
$region0: #{tpu_custom_call.1}
  #allocation0 [shape = 'u32[]', space=smem, size = 0x4, offset = 0x4, fixed_abs, tag = 'smem constant byte address 0x4 - core index']
  #allocation1 [shape = 'u32[144,128]{1,0:T(1,128)}', space=vmem, size = 0x12000, scoped, tag = 'internal scratch']
  %s0 = inlined_call_operand.hbm [shape: f32[8,128], index: 0, kind: input, shape index: {}]
  %s1 = inlined_call_operand.hbm [shape: f32[128,128], index: 1, kind: input, shape index: {}]
  %s2 = inlined_call_operand.vmem [shape: f32[1,128], index: 2, kind: input, shape index: {}]
  %s3 = inlined_call_operand.vmem [shape: f32[1,128], index: 3, kind: input, shape index: {}]
  %s4 = inlined_call_operand.hbm [shape: f32[128,128], index: 4, kind: input, shape index: {}]
  %s5 = inlined_call_operand.vmem [shape: f32[1,128], index: 5, kind: input, shape index: {}]
  %s6 = inlined_call_operand.vmem [shape: f32[1,128], index: 6, kind: input, shape index: {}]
  %s7 = inlined_call_operand.hbm [shape: f32[8,128], index: 7, kind: output, shape index: {}]
  %s8 = sld [smem:[#allocation0]]
  $region50: #{tpu_custom_call.1} parent=0
    _
  %s10 = ssub.s32 1, %s8
  %s11 = scalar_select 0, %s10, %s8
  $region1: #{tpu_custom_call.1} parent=0
    #allocation2 [shape = 'u8[4096]{0}', space=vmem, size = 0x1000, scoped, tag = 'input window, operand 0, single buffered']
    #allocation3 [shape = 's32[1]{0}', space=sflag, size = 0x4, scoped, tag = 'scoped memory for tpu_custom_call.1']
    #allocation4 [shape = 's32[1]{0}', space=sflag, size = 0x4, scoped, tag = 'scoped memory for tpu_custom_call.1']
    #allocation5 [shape = 'u8[65536]{0}', space=vmem, size = 0x10000, scoped, tag = 'input window, operand 1, single buffered']
    #allocation6 [shape = 's32[1]{0}', space=sflag, size = 0x4, scoped, tag = 'scoped memory for tpu_custom_call.1']
    #allocation7 [shape = 'u8[65536]{0}', space=vmem, size = 0x10000, scoped, tag = 'input window, operand 4, single buffered']
    #allocation8 [shape = 'u8[4096]{0}', space=vmem, size = 0x1000, scoped, tag = 'output window, operand 0, single buffered']
    %12 = vsyncpa [#allocation3], 0
    %13 = vsyncpa [#allocation6], 0
    %14 = vsyncpa [#allocation4], 0
    // Predicated region
    $region2: #{tpu_custom_call.1} parent=1 // pred_check
      _
    $region3: #{tpu_custom_call.1} parent=1 // pred_check_branch
      %16 = sbr.rel (0) target = $region5
    $region4: #{tpu_custom_call.1} parent=1 // pred_region
      %s18 = ssub.s32 128, 128
      %19 = vsyncadd [#allocation3], %s18
      %s21 = sshll.u32 [#allocation2], 4
      %s22 = int_to_ptr.vmem [resolvable:$true] %s21
      %24 = dma.hbm_to_vmem [thread:$0]  %s0, 128, %s22, [#allocation3]
    $region5: #{tpu_custom_call.1} parent=1 // pred_fallthru
      _
    // Predicated region
    $region6: #{tpu_custom_call.1} parent=1 // pred_check
      _
    $region7: #{tpu_custom_call.1} parent=1 // pred_check_branch
      %26 = sbr.rel (0) target = $region9
    $region8: #{tpu_custom_call.1} parent=1 // pred_region
      %s28 = ssub.s32 2048, 2048
      %29 = vsyncadd [#allocation6], %s28
      %s30 = sshll.u32 [#allocation5], 4
      %s31 = int_to_ptr.vmem [resolvable:$true] %s30
      %36 = dma.hbm_to_vmem [thread:$0]  %s1, 2048, %s31, [#allocation6], 128, 128, 8
    $region9: #{tpu_custom_call.1} parent=1 // pred_fallthru
      _
    // Predicated region
    $region10: #{tpu_custom_call.1} parent=1 // pred_check
      _
    $region11: #{tpu_custom_call.1} parent=1 // pred_check_branch
      %38 = sbr.rel (0) target = $region13
    $region12: #{tpu_custom_call.1} parent=1 // pred_region
      _
    $region13: #{tpu_custom_call.1} parent=1 // pred_fallthru
      _
    // Predicated region
    $region14: #{tpu_custom_call.1} parent=1 // pred_check
      _
    $region15: #{tpu_custom_call.1} parent=1 // pred_check_branch
      %40 = sbr.rel (0) target = $region17
    $region16: #{tpu_custom_call.1} parent=1 // pred_region
      _
    $region17: #{tpu_custom_call.1} parent=1 // pred_fallthru
      _
    // Predicated region
    $region18: #{tpu_custom_call.1} parent=1 // pred_check
      _
    $region19: #{tpu_custom_call.1} parent=1 // pred_check_branch
      %42 = sbr.rel (0) target = $region21
    $region20: #{tpu_custom_call.1} parent=1 // pred_region
      %s44 = ssub.s32 2048, 2048
      %45 = vsyncadd [#allocation6], %s44
      %s46 = sshll.u32 [#allocation7], 4
      %s47 = int_to_ptr.vmem [resolvable:$true] %s46
      %52 = dma.hbm_to_vmem [thread:$0]  %s4, 2048, %s47, [#allocation6], 128, 128, 8
    $region21: #{tpu_custom_call.1} parent=1 // pred_fallthru
      _
    // Predicated region
    $region22: #{tpu_custom_call.1} parent=1 // pred_check
      _
    $region23: #{tpu_custom_call.1} parent=1 // pred_check_branch
      %54 = sbr.rel (0) target = $region25
    $region24: #{tpu_custom_call.1} parent=1 // pred_region
      _
    $region25: #{tpu_custom_call.1} parent=1 // pred_fallthru
      _
    // Predicated region
    $region26: #{tpu_custom_call.1} parent=1 // pred_check
      _
    $region27: #{tpu_custom_call.1} parent=1 // pred_check_branch
      %56 = sbr.rel (0) target = $region29
    $region28: #{tpu_custom_call.1} parent=1 // pred_region
      _
    $region29: #{tpu_custom_call.1} parent=1 // pred_fallthru
      _
    // Predicated region
    $region30: #{tpu_custom_call.1} parent=1 // pred_check
      _
    $region31: #{tpu_custom_call.1} parent=1 // pred_check_branch
      %58 = sbr.rel (0) target = $region33
    $region32: #{tpu_custom_call.1} parent=1 // pred_region
      %59 = dma.done [#allocation3], 128
    $region33: #{tpu_custom_call.1} parent=1 // pred_fallthru
      _
    // Predicated region
    $region34: #{tpu_custom_call.1} parent=1 // pred_check
      _
    $region35: #{tpu_custom_call.1} parent=1 // pred_check_branch
      %61 = sbr.rel (0) target = $region37
    $region36: #{tpu_custom_call.1} parent=1 // pred_region
      %62 = dma.done [#allocation6], 2048
    $region37: #{tpu_custom_call.1} parent=1 // pred_fallthru
      _
    // Predicated region
    $region38: #{tpu_custom_call.1} parent=1 // pred_check
      _
    $region39: #{tpu_custom_call.1} parent=1 // pred_check_branch
      %64 = sbr.rel (0) target = $region41
    $region40: #{tpu_custom_call.1} parent=1 // pred_region
      %65 = dma.done [#allocation6], 2048
    $region41: #{tpu_custom_call.1} parent=1 // pred_fallthru
      _
    %v66 = vld [vmem:[#allocation2] sm:$0xff]
    %v67 = vld [vmem:[#allocation5] sm:$0xff]
    %v68 = vld [vmem:[#allocation5 + $0x8] sm:$0xff]
    %v69 = vld [vmem:[#allocation5 + $0x10] sm:$0xff]
    %v70 = vld [vmem:[#allocation5 + $0x18] sm:$0xff]
    %v71 = vld [vmem:[#allocation5 + $0x20] sm:$0xff]
    %v72 = vld [vmem:[#allocation5 + $0x28] sm:$0xff]
    %v73 = vld [vmem:[#allocation5 + $0x30] sm:$0xff]
    %v74 = vld [vmem:[#allocation5 + $0x38] sm:$0xff]
    %v75 = vld [vmem:[#allocation5 + $0x40] sm:$0xff]
    %v76 = vld [vmem:[#allocation5 + $0x48] sm:$0xff]
    %v77 = vld [vmem:[#allocation5 + $0x50] sm:$0xff]
    %v78 = vld [vmem:[#allocation5 + $0x58] sm:$0xff]
    %v79 = vld [vmem:[#allocation5 + $0x60] sm:$0xff]
    %v80 = vld [vmem:[#allocation5 + $0x68] sm:$0xff]
    %v81 = vld [vmem:[#allocation5 + $0x70] sm:$0xff]
    %v82 = vld [vmem:[#allocation5 + $0x78] sm:$0xff]
    %83 = vmatprep.subr.mxu0 0.0
    %84 = vmatpush1.msra.mxu0 %v67
    %85 = vmatprep.subr.mxu0 0.0
    %86 = vmatpush1.msra.mxu0 %v68
    %87 = vmatprep.subr.mxu0 0.0
    %88 = vmatpush1.msra.mxu0 %v69
    %89 = vmatprep.subr.mxu0 0.0
    %90 = vmatpush1.msra.mxu0 %v70
    %91 = vmatprep.subr.mxu0 0.0
    %92 = vmatpush1.msra.mxu0 %v71
    %93 = vmatprep.subr.mxu0 0.0
    %94 = vmatpush1.msra.mxu0 %v72
    %95 = vmatprep.subr.mxu0 0.0
    %96 = vmatpush1.msra.mxu0 %v73
    %97 = vmatprep.subr.mxu0 0.0
    %98 = vmatpush1.msra.mxu0 %v74
    %99 = vmatprep.subr.mxu0 0.0
    %100 = vmatpush1.msra.mxu0 %v75
    %101 = vmatprep.subr.mxu0 0.0
    %102 = vmatpush1.msra.mxu0 %v76
    %103 = vmatprep.subr.mxu0 0.0
    %104 = vmatpush1.msra.mxu0 %v77
    %105 = vmatprep.subr.mxu0 0.0
    %106 = vmatpush1.msra.mxu0 %v78
    %107 = vmatprep.subr.mxu0 0.0
    %108 = vmatpush1.msra.mxu0 %v79
    %109 = vmatprep.subr.mxu0 0.0
    %110 = vmatpush1.msra.mxu0 %v80
    %111 = vmatprep.subr.mxu0 0.0
    %112 = vmatpush1.msra.mxu0 %v81
    %113 = vmatprep.subr.mxu0 0.0
    %114 = vmatpush1.msra.mxu0 %v82
    %115 = vmatprep.subr.mxu0 0.0
    %116 = vmatpush1.msra.mxu0 0.0
    %117 = vmatprep.subr.mxu0 0.0
    %118 = vmatpush1.msra.mxu0 0.0
    %119 = vmatprep.subr.mxu0 0.0
    %120 = vmatpush1.msra.mxu0 0.0
    %121 = vmatprep.subr.mxu0 0.0
    %122 = vmatpush1.msra.mxu0 0.0
    %123 = vmatprep.subr.mxu0 0.0
    %124 = vmatpush1.msra.mxu0 0.0
    %125 = vmatprep.subr.mxu0 0.0
    %126 = vmatpush1.msra.mxu0 0.0
    %127 = vmatprep.subr.mxu0 0.0
    %128 = vmatpush1.msra.mxu0 0.0
    %129 = vmatprep.subr.mxu0 0.0
    %130 = vmatpush1.msra.mxu0 0.0
    %131 = vmatprep.subr.mxu0 0.0
    %132 = vmatpush1.msra.mxu0 0.0
    %133 = vmatprep.subr.mxu0 0.0
    %134 = vmatpush1.msra.mxu0 0.0
    %135 = vmatprep.subr.mxu0 0.0
    %136 = vmatpush1.msra.mxu0 0.0
    %137 = vmatprep.subr.mxu0 0.0
    %138 = vmatpush1.msra.mxu0 0.0
    %139 = vmatprep.subr.mxu0 0.0
    %140 = vmatpush1.msra.mxu0 0.0
    %141 = vmatprep.subr.mxu0 0.0
    %142 = vmatpush1.msra.mxu0 0.0
    %143 = vmatprep.subr.mxu0 0.0
    %144 = vmatpush1.msra.mxu0 0.0
    %145 = vmatprep.subr.mxu0 0.0
    %146 = vmatpush1.msra.mxu0 0.0
    %147 = vmatprep.mubr.f32.mxu0 0.0
    %148 = vmatmul.mubr.f32.gmra.mrb[0].mxu0 %v66
    %v149 = vpop.f32.mrb[0].mxu0
    %v150 = vadd.f32 0.0, %v149
    %v151 = vpop.f32.mrb[0].mxu0
    %152 = vdwg.mxu0
    %v153 = vrot.slane %v150, 4
    %v154 = vadd.f32 %v150, %v153
    %v155 = vrot.slane %v154, 2
    %v156 = vadd.f32 %v154, %v155
    %v157 = vrot.slane %v156, 1
    %v158 = vadd.f32 %v156, %v157
    %v159 = vmul.f32 %v158, 0.125
    %v160 = vsub.f32 %v150, %v159
    %v161 = vmul.f32 %v160, %v160
    %v162 = vrot.slane %v161, 4
    %v163 = vadd.f32 %v161, %v162
    %v164 = vrot.slane %v163, 2
    %v165 = vadd.f32 %v163, %v164
    %v166 = vrot.slane %v165, 1
    %v167 = vadd.f32 %v165, %v166
    %v168 = vmul.f32 %v167, 0.125
    %v169 = vadd.f32 %v168, 1e-05
    %v170 = vrsqrt.pop %v169
    %v171 = vld [vmem:[%s2] sm:$0x1]
    %v172 = vmul.f32 %v170, %v171
    %v173 = vlaneseq
    %v174 = vshrl.u32 %v173, 7
    %v175 = vsub.s32 0, %v174
    %v176 = vrot.slane %v172, %v175
    %v177 = vmul.f32 %v160, %v176
    %v178 = vld [vmem:[%s3] sm:$0x1]
    %v180 = vlaneseq
    %v181 = vshrl.u32 %v180, 7
    %v182 = vsub.s32 0, %v181
    %v183 = vrot.slane %v178, %v182
    %v185 = vadd.f32 %v177, %v183
    %v186 = vmax.f32 %v185, 0.0
    %v187 = vld [vmem:[#allocation7] sm:$0xff]
    %v188 = vld [vmem:[#allocation7 + $0x8] sm:$0xff]
    %v189 = vld [vmem:[#allocation7 + $0x10] sm:$0xff]
    %v190 = vld [vmem:[#allocation7 + $0x18] sm:$0xff]
    %v191 = vld [vmem:[#allocation7 + $0x20] sm:$0xff]
    %v192 = vld [vmem:[#allocation7 + $0x28] sm:$0xff]
    %v193 = vld [vmem:[#allocation7 + $0x30] sm:$0xff]
    %v194 = vld [vmem:[#allocation7 + $0x38] sm:$0xff]
    %v195 = vld [vmem:[#allocation7 + $0x40] sm:$0xff]
    %v196 = vld [vmem:[#allocation7 + $0x48] sm:$0xff]
    %v197 = vld [vmem:[#allocation7 + $0x50] sm:$0xff]
    %v198 = vld [vmem:[#allocation7 + $0x58] sm:$0xff]
    %v199 = vld [vmem:[#allocation7 + $0x60] sm:$0xff]
    %v200 = vld [vmem:[#allocation7 + $0x68] sm:$0xff]
    %v201 = vld [vmem:[#allocation7 + $0x70] sm:$0xff]
    %v202 = vld [vmem:[#allocation7 + $0x78] sm:$0xff]
    %203 = vmatprep.subr.mxu0 0.0
    %204 = vmatpush1.msra.mxu0 %v187
    %205 = vmatprep.subr.mxu0 0.0
    %206 = vmatpush1.msra.mxu0 %v188
    %207 = vmatprep.subr.mxu0 0.0
    %208 = vmatpush1.msra.mxu0 %v189
    %209 = vmatprep.subr.mxu0 0.0
    %210 = vmatpush1.msra.mxu0 %v190
    %211 = vmatprep.subr.mxu0 0.0
    %212 = vmatpush1.msra.mxu0 %v191
    %213 = vmatprep.subr.mxu0 0.0
    %214 = vmatpush1.msra.mxu0 %v192
    %215 = vmatprep.subr.mxu0 0.0
    %216 = vmatpush1.msra.mxu0 %v193
    %217 = vmatprep.subr.mxu0 0.0
    %218 = vmatpush1.msra.mxu0 %v194
    %219 = vmatprep.subr.mxu0 0.0
    %220 = vmatpush1.msra.mxu0 %v195
    %221 = vmatprep.subr.mxu0 0.0
    %222 = vmatpush1.msra.mxu0 %v196
    %223 = vmatprep.subr.mxu0 0.0
    %224 = vmatpush1.msra.mxu0 %v197
    %225 = vmatprep.subr.mxu0 0.0
    %226 = vmatpush1.msra.mxu0 %v198
    %227 = vmatprep.subr.mxu0 0.0
    %228 = vmatpush1.msra.mxu0 %v199
    %229 = vmatprep.subr.mxu0 0.0
    %230 = vmatpush1.msra.mxu0 %v200
    %231 = vmatprep.subr.mxu0 0.0
    %232 = vmatpush1.msra.mxu0 %v201
    %233 = vmatprep.subr.mxu0 0.0
    %234 = vmatpush1.msra.mxu0 %v202
    %235 = vmatprep.subr.mxu0 0.0
    %236 = vmatpush1.msra.mxu0 0.0
    %237 = vmatprep.subr.mxu0 0.0
    %238 = vmatpush1.msra.mxu0 0.0
    %239 = vmatprep.subr.mxu0 0.0
    %240 = vmatpush1.msra.mxu0 0.0
    %241 = vmatprep.subr.mxu0 0.0
    %242 = vmatpush1.msra.mxu0 0.0
    %243 = vmatprep.subr.mxu0 0.0
    %244 = vmatpush1.msra.mxu0 0.0
    %245 = vmatprep.subr.mxu0 0.0
    %246 = vmatpush1.msra.mxu0 0.0
    %247 = vmatprep.subr.mxu0 0.0
    %248 = vmatpush1.msra.mxu0 0.0
    %249 = vmatprep.subr.mxu0 0.0
    %250 = vmatpush1.msra.mxu0 0.0
    %251 = vmatprep.subr.mxu0 0.0
    %252 = vmatpush1.msra.mxu0 0.0
    %253 = vmatprep.subr.mxu0 0.0
    %254 = vmatpush1.msra.mxu0 0.0
    %255 = vmatprep.subr.mxu0 0.0
    %256 = vmatpush1.msra.mxu0 0.0
    %257 = vmatprep.subr.mxu0 0.0
    %258 = vmatpush1.msra.mxu0 0.0
    %259 = vmatprep.subr.mxu0 0.0
    %260 = vmatpush1.msra.mxu0 0.0
    %261 = vmatprep.subr.mxu0 0.0
    %262 = vmatpush1.msra.mxu0 0.0
    %263 = vmatprep.subr.mxu0 0.0
    %264 = vmatpush1.msra.mxu0 0.0
    %265 = vmatprep.subr.mxu0 0.0
    %266 = vmatpush1.msra.mxu0 0.0
    %267 = vmatprep.mubr.f32.mxu0 0.0
    %268 = vmatmul.mubr.f32.gmra.mrb[0].mxu0 %v186
    %v269 = vpop.f32.mrb[0].mxu0
    %v270 = vadd.f32 0.0, %v269
    %v271 = vpop.f32.mrb[0].mxu0
    %272 = vdwg.mxu0
    %v273 = vrot.slane %v270, 4
    %v274 = vadd.f32 %v270, %v273
    %v275 = vrot.slane %v274, 2
    %v276 = vadd.f32 %v274, %v275
    %v277 = vrot.slane %v276, 1
    %v278 = vadd.f32 %v276, %v277
    %v279 = vmul.f32 %v278, 0.125
    %v280 = vsub.f32 %v270, %v279
    %v281 = vmul.f32 %v280, %v280
    %v282 = vrot.slane %v281, 4
    %v283 = vadd.f32 %v281, %v282
    %v284 = vrot.slane %v283, 2
    %v285 = vadd.f32 %v283, %v284
    %v286 = vrot.slane %v285, 1
    %v287 = vadd.f32 %v285, %v286
    %v288 = vmul.f32 %v287, 0.125
    %v289 = vadd.f32 %v288, 1e-05
    %v290 = vrsqrt.pop %v289
    %v291 = vld [vmem:[%s5] sm:$0x1]
    %v292 = vmul.f32 %v290, %v291
    %v293 = vlaneseq
    %v294 = vshrl.u32 %v293, 7
    %v295 = vsub.s32 0, %v294
    %v296 = vrot.slane %v292, %v295
    %v297 = vmul.f32 %v280, %v296
    %v298 = vld [vmem:[%s6] sm:$0x1]
    %v300 = vlaneseq
    %v301 = vshrl.u32 %v300, 7
    %v302 = vsub.s32 0, %v301
    %v303 = vrot.slane %v298, %v302
    %v305 = vadd.f32 %v297, %v303
    %v306 = vmax.f32 %v305, 0.0
    %307 = vst [vmem:[#allocation8] sm:$0xff] %v306
    // Predicated region
    $region42: #{tpu_custom_call.1} parent=1 // pred_check
      _
    $region43: #{tpu_custom_call.1} parent=1 // pred_check_branch
      %309 = sbr.rel (0) target = $region45
    $region44: #{tpu_custom_call.1} parent=1 // pred_region
      %s311 = ssub.s32 128, 128
      %312 = vsyncadd [#allocation4], %s311
      %s314 = sshll.u32 [#allocation8], 4
      %s315 = int_to_ptr.vmem [resolvable:$true] %s314
      %317 = dma.vmem_to_hbm [thread:$0]  %s315, 128, %s7, [#allocation4]
    $region45: #{tpu_custom_call.1} parent=1 // pred_fallthru
      _
    // Predicated region
    $region46: #{tpu_custom_call.1} parent=1 // pred_check
      _
    $region47: #{tpu_custom_call.1} parent=1 // pred_check_branch
      %319 = sbr.rel (0) target = $region49
    $region48: #{tpu_custom_call.1} parent=1 // pred_region
      %320 = dma.done [#allocation4], 128
    $region49: #{tpu_custom_call.1} parent=1 // pred_fallthru
      _
    %321 = vsyncpa [#allocation3], 1
    %322 = vsyncpa [#allocation6], 1
    %323 = vsyncpa [#allocation4], 1

</llo_original>
